<compile_context>
chip_gen: v5e
topology: v5e:2x2
jax: 0.10.0
libtpu: 0.0.40
codegen_flags: <defaults>
</compile_context>

<pallas_src>
import jax
import jax.numpy as jnp
from jax.experimental import pallas as pl
from jax.experimental.pallas import tpu as pltpu

# ---- small synthetic shapes consistent with the module ----
B = 2             # batch
S = 8             # text sequence length
EMB = 256         # gpt_embedding_size (stand-in for 768)
HIDDEN = EMB // 2 # 128
VOCAB = 512       # synthetic GPT-2 wte vocab
MASK_ID = 50257   # sentinel used by the reference forward
N_PATCH = 16      # CLIP patch tokens (stand-in for 196)
CLIP_PATCH_DIM = 256   # CLIP patch feature dim (stand-in for 768)
CLIP_CLS_DIM = 128     # CLIP cls feature dim (stand-in for 512)
IMG_C, IMG_H, IMG_W = 3, 16, 16
PATCH = 4
PATCH_PIX = IMG_C * PATCH * PATCH   # 48
PATCH_PIX_PAD = 128                 # lane-dense pad of the patch-pixel dim
PREFIX_LENGTH = 10
LEN_OUT = 20
LEN_OUT_PAD = 128                   # lane-dense pad of the len_head output


# ------------------------------------------------------------------ fused kernel
def _fused_forward_kernel(
        mask_ref, emb_ref, bos_ref,                              # text path
        x_ref, pe_w_ref, pe_b_ref, pool_ref, cls_w_ref, cls_b_ref,   # frozen image encoder stub
        cp_w1_ref, cp_b1_ref, cp_w2_ref, cp_b2_ref,              # clip_project MLP
        lh_w1_ref, lh_b1_ref, lh_w2_ref, lh_b2_ref,              # len_head MLP
        emb_out_ref, proj_out_ref, len_out_ref):
    # --- BOS substitution: torch.where(mask_tokens == 50257, bos, emb) ---
    use_bos = mask_ref[...] != 0                                  # (B*S, 1) bool
    emb_out_ref[...] = jnp.where(use_bos, bos_ref[...], emb_ref[...])

    # --- frozen CLIP patch-embed stub (no grad in reference) ---
    pf = jnp.dot(x_ref[...], pe_w_ref[...],
                 preferred_element_type=jnp.float32) + pe_b_ref[...]        # (B*P, 256)
    # mean-pool over patches expressed as a tiny matmul with a block-diag pooling matrix
    pooled = jnp.dot(pool_ref[...], pf, preferred_element_type=jnp.float32)  # (B, 256)
    len_cls = jnp.dot(pooled, cls_w_ref[...],
                      preferred_element_type=jnp.float32) + cls_b_ref[...]   # (B, 128)

    # --- clip_project = MLP(768, E/2, E), tanh between layers ---
    h = jnp.tanh(jnp.dot(pf, cp_w1_ref[...],
                         preferred_element_type=jnp.float32) + cp_b1_ref[...])
    proj_out_ref[...] = (jnp.dot(h, cp_w2_ref[...],
                                 preferred_element_type=jnp.float32)
                         + cp_b2_ref[...]).astype(proj_out_ref.dtype)

    # --- len_head = MLP(512, E/2, 20), tanh between layers (output padded to 128 lanes) ---
    h2 = jnp.tanh(jnp.dot(len_cls, lh_w1_ref[...],
                          preferred_element_type=jnp.float32) + lh_b1_ref[...])
    len_out_ref[...] = (jnp.dot(h2, lh_w2_ref[...],
                                preferred_element_type=jnp.float32)
                        + lh_b2_ref[...]).astype(len_out_ref.dtype)


def _spec2d(shape):
    return pl.BlockSpec(shape, lambda i: (0, 0))


def fused_forward(kp, bos_mask, emb2d, x_pad, batch):
    rows_txt, e = emb2d.shape
    rows_img = x_pad.shape[0]
    # block-diagonal averaging matrix: pooled[b] = mean_p pf[b, p]
    pool = jnp.repeat(jnp.eye(batch, dtype=jnp.float32), N_PATCH, axis=1) / N_PATCH

    inputs = (bos_mask, emb2d, kp["bos2d"], x_pad,
              kp["pe_w"], kp["pe_b"], pool, kp["cls_w"], kp["cls_b"],
              kp["cp_w1"], kp["cp_b1"], kp["cp_w2"], kp["cp_b2"],
              kp["lh_w1"], kp["lh_b1"], kp["lh_w2"], kp["lh_b2"])

    out_shape = (jax.ShapeDtypeStruct((rows_txt, e), jnp.float32),
                 jax.ShapeDtypeStruct((rows_img, EMB), jnp.float32),
                 jax.ShapeDtypeStruct((batch, LEN_OUT_PAD), jnp.float32))

    return pl.pallas_call(
        _fused_forward_kernel,
        out_shape=out_shape,
        grid=(1,),
        in_specs=[_spec2d(a.shape) for a in inputs],
        out_specs=[_spec2d(s.shape) for s in out_shape],
        input_output_aliases={1: 0},   # reuse embedding_text HBM buffer for emb_out
        compiler_params=pltpu.CompilerParams(
            dimension_semantics=("arbitrary",)),
    )(*inputs)


# ------------------------------------------------------------------ params
def _trunc_normal(key, shape, std=0.02):
    return std * jax.random.truncated_normal(key, -2.0, 2.0, shape, jnp.float32)


def init_params(key):
    ks = jax.random.split(key, 12)
    p = {}
    p["wte"] = _trunc_normal(ks[0], (VOCAB, EMB))                    # gpt.transformer.wte
    p["bos_embedding"] = jax.random.normal(ks[1], (EMB,), jnp.float32)
    p["pad_embedding"] = jax.random.normal(ks[2], (N_PATCH, EMB), jnp.float32)  # training-only
    # clip_project = MLP((CLIP_PATCH_DIM, EMB // 2, EMB)), Tanh between layers, zero bias
    p["cp_w1"] = _trunc_normal(ks[3], (CLIP_PATCH_DIM, HIDDEN))
    p["cp_b1"] = jnp.zeros((HIDDEN,), jnp.float32)
    p["cp_w2"] = _trunc_normal(ks[4], (HIDDEN, EMB))
    p["cp_b2"] = jnp.zeros((EMB,), jnp.float32)
    # len_head = MLP((CLIP_CLS_DIM, EMB // 2, 20)), Tanh between layers, zero bias
    p["lh_w1"] = _trunc_normal(ks[5], (CLIP_CLS_DIM, HIDDEN))
    p["lh_b1"] = jnp.zeros((HIDDEN,), jnp.float32)
    p["lh_w2"] = _trunc_normal(ks[6], (HIDDEN, LEN_OUT))
    p["lh_b2"] = jnp.zeros((LEN_OUT,), jnp.float32)
    # deterministic stub weights for the frozen CLIP image encoder
    p["pe_w"] = _trunc_normal(ks[7], (PATCH_PIX, CLIP_PATCH_DIM))
    p["pe_b"] = jnp.zeros((CLIP_PATCH_DIM,), jnp.float32)
    p["cls_w"] = _trunc_normal(ks[8], (CLIP_PATCH_DIM, CLIP_CLS_DIM))
    p["cls_b"] = jnp.zeros((CLIP_CLS_DIM,), jnp.float32)
    return p


def prepare_kernel_params(p):
    """One-time layout plumbing: lane-dense zero-padding + (1, N) bias reshape."""
    kp = {}
    kp["bos2d"] = p["bos_embedding"].reshape(1, EMB)
    kp["pe_w"] = jnp.zeros((PATCH_PIX_PAD, CLIP_PATCH_DIM),
                           jnp.float32).at[:PATCH_PIX].set(p["pe_w"])
    kp["pe_b"] = p["pe_b"].reshape(1, CLIP_PATCH_DIM)
    kp["cls_w"] = p["cls_w"]
    kp["cls_b"] = p["cls_b"].reshape(1, CLIP_CLS_DIM)
    kp["cp_w1"] = p["cp_w1"]
    kp["cp_b1"] = p["cp_b1"].reshape(1, HIDDEN)
    kp["cp_w2"] = p["cp_w2"]
    kp["cp_b2"] = p["cp_b2"].reshape(1, EMB)
    kp["lh_w1"] = p["lh_w1"]
    kp["lh_b1"] = p["lh_b1"].reshape(1, HIDDEN)
    kp["lh_w2"] = jnp.zeros((HIDDEN, LEN_OUT_PAD),
                            jnp.float32).at[:, :LEN_OUT].set(p["lh_w2"])
    kp["lh_b2"] = jnp.zeros((1, LEN_OUT_PAD),
                            jnp.float32).at[:, :LEN_OUT].set(p["lh_b2"])
    return kp


# ------------------------------------------------------------------ forward
def clip_caption_forward(params, kparams, tokens, mask_tokens, prefix,
                         keyword=None, mask=None, t=None, labels=None):
    batch, seq = tokens.shape

    # 1) text embedding lookup: cheap XLA gather glue (fuses with the compare below)
    embedding_text = jnp.take(params["wte"], tokens, axis=0)          # (B, S, EMB)
    emb2d = embedding_text.reshape(batch * seq, EMB)
    bos_mask = (mask_tokens == MASK_ID).astype(jnp.int32).reshape(batch * seq, 1)

    # 2) patchify NCHW image into a lane-dense (B*N_PATCH, 128) slab (zero-pad 48 -> 128)
    #    TODO(synk): frozen CLIP ViT-B/16 (clip_model.encode_image) has no in-script
    #    equivalent; replaced by a deterministic patch-embed + pooled-cls stub that
    #    reproduces the downstream shapes.
    x = prefix.reshape(batch, IMG_C, IMG_H // PATCH, PATCH, IMG_W // PATCH, PATCH)
    x = jnp.transpose(x, (0, 2, 4, 1, 3, 5)).reshape(batch * N_PATCH, PATCH_PIX)
    x_pad = jnp.pad(x, ((0, 0), (0, PATCH_PIX_PAD - PATCH_PIX)))

    # 3) single fused Pallas kernel for the whole hot path
    emb_out, proj_out, len_pad = fused_forward(kparams, bos_mask, emb2d, x_pad, batch)

    embedding_text = emb_out.reshape(batch, seq, EMB)
    prefix_projections = proj_out.reshape(batch, N_PATCH, EMB)
    len_pred = len_pad[:, :LEN_OUT]
    # eval mode: the training-only pad_embedding dropout loop is skipped.

    if labels is not None:
        dummy = jnp.zeros((batch, PREFIX_LENGTH), dtype=tokens.dtype)
        labels = jnp.concatenate([dummy, tokens], axis=1)

    # TODO(synk): GPT2LMHeadModel and the kw_att enc-dec Transformer (keyword path) are
    # external pretrained submodules with no clean in-script Pallas equivalent; return
    # the tensors that would feed the GPT instead of its logits.
    out = (embedding_text, prefix_projections, labels)
    return out, len_pred


# ------------------------------------------------------------------ reference (pure JAX)
def reference_forward(params, tokens, mask_tokens, prefix):
    emb = jnp.take(params["wte"], tokens, axis=0)
    m = (mask_tokens == MASK_ID)[:, :, None]
    emb = jnp.where(m, params["bos_embedding"][None, None, :], emb)
    b = prefix.shape[0]
    x = prefix.reshape(b, IMG_C, IMG_H // PATCH, PATCH, IMG_W // PATCH, PATCH)
    x = jnp.transpose(x, (0, 2, 4, 1, 3, 5)).reshape(b * N_PATCH, PATCH_PIX)
    pf = (x @ params["pe_w"] + params["pe_b"]).reshape(b, N_PATCH, CLIP_PATCH_DIM)
    len_cls = jnp.mean(pf, axis=1) @ params["cls_w"] + params["cls_b"]
    h = jnp.tanh(pf.reshape(-1, CLIP_PATCH_DIM) @ params["cp_w1"] + params["cp_b1"])
    proj = (h @ params["cp_w2"] + params["cp_b2"]).reshape(b, N_PATCH, EMB)
    h2 = jnp.tanh(len_cls @ params["lh_w1"] + params["lh_b1"])
    len_pred = h2 @ params["lh_w2"] + params["lh_b2"]
    return emb, proj, len_pred


if __name__ == "__main__":
    key = jax.random.PRNGKey(0)
    kp_, kt, km, ki = jax.random.split(key, 4)
    params = init_params(kp_)
    kparams = jax.tree_util.tree_map(jnp.asarray, prepare_kernel_params(params))

    tokens = jax.random.randint(kt, (B, S), 0, VOCAB, dtype=jnp.int32)
    # mask_tokens: some positions carry the MASK_ID sentinel -> use bos_embedding there
    bos_positions = jax.random.bernoulli(km, 0.5, (B, S))
    mask_tokens = jnp.where(bos_positions, jnp.int32(MASK_ID), tokens)
    prefix_image = jax.random.normal(ki, (B, IMG_C, IMG_H, IMG_W), jnp.float32)  # NCHW

    fwd = jax.jit(lambda p, kp, tok, mtok, img: clip_caption_forward(p, kp, tok, mtok, img))
    (emb_text, prefix_proj, _), len_pred = fwd(params, kparams, tokens, mask_tokens,
                                               prefix_image)
    jax.block_until_ready((emb_text, prefix_proj, len_pred))

    # sanity check against a pure-JAX reference
    r_emb, r_proj, r_len = reference_forward(params, tokens, mask_tokens, prefix_image)
    assert jnp.allclose(emb_text, r_emb, atol=1e-5), "embedding/where mismatch"
    assert jnp.allclose(prefix_proj, r_proj, atol=1e-4), "clip_project mismatch"
    assert jnp.allclose(len_pred, r_len, atol=1e-4), "len_head mismatch"

    print("KERNEL_OK")
</pallas_src>

<mosaic_0001>
module attributes {stable_mosaic.version = 11 : i64} {
  func.func @_fused_forward_kernel(%arg0: i32, %arg1: memref<16x1xi32, #tpu.memory_space<vmem>>, %arg2: memref<16x256xf32, #tpu.memory_space<vmem>>, %arg3: memref<1x256xf32, #tpu.memory_space<vmem>>, %arg4: memref<32x128xf32, #tpu.memory_space<vmem>>, %arg5: memref<128x256xf32, #tpu.memory_space<vmem>>, %arg6: memref<1x256xf32, #tpu.memory_space<vmem>>, %arg7: memref<2x32xf32, #tpu.memory_space<vmem>>, %arg8: memref<256x128xf32, #tpu.memory_space<vmem>>, %arg9: memref<1x128xf32, #tpu.memory_space<vmem>>, %arg10: memref<256x128xf32, #tpu.memory_space<vmem>>, %arg11: memref<1x128xf32, #tpu.memory_space<vmem>>, %arg12: memref<128x256xf32, #tpu.memory_space<vmem>>, %arg13: memref<1x256xf32, #tpu.memory_space<vmem>>, %arg14: memref<128x128xf32, #tpu.memory_space<vmem>>, %arg15: memref<1x128xf32, #tpu.memory_space<vmem>>, %arg16: memref<128x128xf32, #tpu.memory_space<vmem>>, %arg17: memref<1x128xf32, #tpu.memory_space<vmem>>, %arg18: memref<16x256xf32, #tpu.memory_space<vmem>>, %arg19: memref<32x256xf32, #tpu.memory_space<vmem>>, %arg20: memref<2x128xf32, #tpu.memory_space<vmem>>) attributes {dimension_semantics = [#tpu.dimension_semantics<arbitrary>], iteration_bounds = array<i64: 1>, scalar_prefetch = 0 : i64, scratch_operands = 0 : i64, tpu.core_type = #tpu.core_type<tc>, window_params = [{pipeline_mode = #tpu.pipeline_mode<synchronous>, transform_indices = @transform_0, window_bounds = array<i64: 16, 1>}, {pipeline_mode = #tpu.pipeline_mode<synchronous>, transform_indices = @transform_1, window_bounds = array<i64: 16, 256>}, {pipeline_mode = #tpu.pipeline_mode<synchronous>, transform_indices = @transform_2, window_bounds = array<i64: 1, 256>}, {pipeline_mode = #tpu.pipeline_mode<synchronous>, transform_indices = @transform_3, window_bounds = array<i64: 32, 128>}, {pipeline_mode = #tpu.pipeline_mode<synchronous>, transform_indices = @transform_4, window_bounds = array<i64: 128, 256>}, {pipeline_mode = #tpu.pipeline_mode<synchronous>, transform_indices = @transform_5, window_bounds = array<i64: 1, 256>}, {pipeline_mode = #tpu.pipeline_mode<synchronous>, transform_indices = @transform_6, window_bounds = array<i64: 2, 32>}, {pipeline_mode = #tpu.pipeline_mode<synchronous>, transform_indices = @transform_7, window_bounds = array<i64: 256, 128>}, {pipeline_mode = #tpu.pipeline_mode<synchronous>, transform_indices = @transform_8, window_bounds = array<i64: 1, 128>}, {pipeline_mode = #tpu.pipeline_mode<synchronous>, transform_indices = @transform_9, window_bounds = array<i64: 256, 128>}, {pipeline_mode = #tpu.pipeline_mode<synchronous>, transform_indices = @transform_10, window_bounds = array<i64: 1, 128>}, {pipeline_mode = #tpu.pipeline_mode<synchronous>, transform_indices = @transform_11, window_bounds = array<i64: 128, 256>}, {pipeline_mode = #tpu.pipeline_mode<synchronous>, transform_indices = @transform_12, window_bounds = array<i64: 1, 256>}, {pipeline_mode = #tpu.pipeline_mode<synchronous>, transform_indices = @transform_13, window_bounds = array<i64: 128, 128>}, {pipeline_mode = #tpu.pipeline_mode<synchronous>, transform_indices = @transform_14, window_bounds = array<i64: 1, 128>}, {pipeline_mode = #tpu.pipeline_mode<synchronous>, transform_indices = @transform_15, window_bounds = array<i64: 128, 128>}, {pipeline_mode = #tpu.pipeline_mode<synchronous>, transform_indices = @transform_16, window_bounds = array<i64: 1, 128>}, {pipeline_mode = #tpu.pipeline_mode<synchronous>, transform_indices = @transform_17, window_bounds = array<i64: 16, 256>}, {pipeline_mode = #tpu.pipeline_mode<synchronous>, transform_indices = @transform_18, window_bounds = array<i64: 32, 256>}, {pipeline_mode = #tpu.pipeline_mode<synchronous>, transform_indices = @transform_19, window_bounds = array<i64: 2, 128>}]} {
    %c0 = arith.constant 0 : index
    %c0_0 = arith.constant 0 : index
    %0 = vector.load %arg1[%c0, %c0_0] : memref<16x1xi32, #tpu.memory_space<vmem>>, vector<16x1xi32>
    %c0_i32 = arith.constant 0 : i32
    %1 = vector.broadcast %c0_i32 : i32 to vector<16x1xi32>
    %2 = arith.cmpi ne, %0, %1 : vector<16x1xi32>
    %c0_1 = arith.constant 0 : index
    %c0_2 = arith.constant 0 : index
    %3 = vector.load %arg3[%c0_1, %c0_2] : memref<1x256xf32, #tpu.memory_space<vmem>>, vector<1x256xf32>
    %c0_3 = arith.constant 0 : index
    %c0_4 = arith.constant 0 : index
    %4 = vector.load %arg2[%c0_3, %c0_4] : memref<16x256xf32, #tpu.memory_space<vmem>>, vector<16x256xf32>
    %5 = vector.shape_cast %2 : vector<16x1xi1> to vector<16x1xi1>
    %6 = vector.broadcast %5 : vector<16x1xi1> to vector<16x256xi1>
    %7 = vector.shape_cast %3 : vector<1x256xf32> to vector<1x256xf32>
    %8 = vector.broadcast %7 : vector<1x256xf32> to vector<16x256xf32>
    %9 = arith.select %6, %8, %4 : vector<16x256xi1>, vector<16x256xf32>
    %c0_5 = arith.constant 0 : index
    %c0_6 = arith.constant 0 : index
    %10 = vector.load %arg18[%c0_5, %c0_6] : memref<16x256xf32, #tpu.memory_space<vmem>>, vector<16x256xf32>
    tpu.vector_store %arg18[%c0_5, %c0_6], %9 {strides = array<i32>} : memref<16x256xf32, #tpu.memory_space<vmem>>, vector<16x256xf32>,
    %c0_7 = arith.constant 0 : index
    %c0_8 = arith.constant 0 : index
    %11 = vector.load %arg4[%c0_7, %c0_8] : memref<32x128xf32, #tpu.memory_space<vmem>>, vector<32x128xf32>
    %c0_9 = arith.constant 0 : index
    %c0_10 = arith.constant 0 : index
    %12 = vector.load %arg5[%c0_9, %c0_10] : memref<128x256xf32, #tpu.memory_space<vmem>>, vector<128x256xf32>
    %cst = arith.constant dense<0.000000e+00> : vector<32x256xf32>
    %13 = tpu.matmul %11, %12, %cst {dimension_numbers = #tpu.dot_dimension_numbers<[1], [0], [0], [1], [0, 0, 1, 1], [], []>} : vector<32x128xf32>, vector<128x256xf32>, vector<32x256xf32> -> vector<32x256xf32>
    %c0_11 = arith.constant 0 : index
    %c0_12 = arith.constant 0 : index
    %14 = vector.load %arg6[%c0_11, %c0_12] : memref<1x256xf32, #tpu.memory_space<vmem>>, vector<1x256xf32>
    %15 = vector.broadcast %14 : vector<1x256xf32> to vector<32x256xf32>
    %16 = arith.addf %13, %15 : vector<32x256xf32>
    %c0_13 = arith.constant 0 : index
    %c0_14 = arith.constant 0 : index
    %17 = vector.load %arg7[%c0_13, %c0_14] : memref<2x32xf32, #tpu.memory_space<vmem>>, vector<2x32xf32>
    %cst_15 = arith.constant dense<0.000000e+00> : vector<2x256xf32>
    %18 = tpu.matmul %17, %16, %cst_15 {dimension_numbers = #tpu.dot_dimension_numbers<[1], [0], [0], [1], [0, 0, 1, 1], [], []>} : vector<2x32xf32>, vector<32x256xf32>, vector<2x256xf32> -> vector<2x256xf32>
    %c0_16 = arith.constant 0 : index
    %c0_17 = arith.constant 0 : index
    %19 = vector.load %arg8[%c0_16, %c0_17] : memref<256x128xf32, #tpu.memory_space<vmem>>, vector<256x128xf32>
    %cst_18 = arith.constant dense<0.000000e+00> : vector<2x128xf32>
    %20 = tpu.matmul %18, %19, %cst_18 {dimension_numbers = #tpu.dot_dimension_numbers<[1], [0], [0], [1], [0, 0, 1, 1], [], []>} : vector<2x256xf32>, vector<256x128xf32>, vector<2x128xf32> -> vector<2x128xf32>
    %c0_19 = arith.constant 0 : index
    %c0_20 = arith.constant 0 : index
    %21 = vector.load %arg9[%c0_19, %c0_20] : memref<1x128xf32, #tpu.memory_space<vmem>>, vector<1x128xf32>
    %22 = vector.broadcast %21 : vector<1x128xf32> to vector<2x128xf32>
    %23 = arith.addf %20, %22 : vector<2x128xf32>
    %c0_21 = arith.constant 0 : index
    %c0_22 = arith.constant 0 : index
    %24 = vector.load %arg10[%c0_21, %c0_22] : memref<256x128xf32, #tpu.memory_space<vmem>>, vector<256x128xf32>
    %cst_23 = arith.constant dense<0.000000e+00> : vector<32x128xf32>
    %25 = tpu.matmul %16, %24, %cst_23 {dimension_numbers = #tpu.dot_dimension_numbers<[1], [0], [0], [1], [0, 0, 1, 1], [], []>} : vector<32x256xf32>, vector<256x128xf32>, vector<32x128xf32> -> vector<32x128xf32>
    %c0_24 = arith.constant 0 : index
    %c0_25 = arith.constant 0 : index
    %26 = vector.load %arg11[%c0_24, %c0_25] : memref<1x128xf32, #tpu.memory_space<vmem>>, vector<1x128xf32>
    %27 = vector.broadcast %26 : vector<1x128xf32> to vector<32x128xf32>
    %28 = arith.addf %25, %27 : vector<32x128xf32>
    %29 = math.tanh %28 : vector<32x128xf32>
    %c0_26 = arith.constant 0 : index
    %c0_27 = arith.constant 0 : index
    %30 = vector.load %arg12[%c0_26, %c0_27] : memref<128x256xf32, #tpu.memory_space<vmem>>, vector<128x256xf32>
    %cst_28 = arith.constant dense<0.000000e+00> : vector<32x256xf32>
    %31 = tpu.matmul %29, %30, %cst_28 {dimension_numbers = #tpu.dot_dimension_numbers<[1], [0], [0], [1], [0, 0, 1, 1], [], []>} : vector<32x128xf32>, vector<128x256xf32>, vector<32x256xf32> -> vector<32x256xf32>
    %c0_29 = arith.constant 0 : index
    %c0_30 = arith.constant 0 : index
    %32 = vector.load %arg13[%c0_29, %c0_30] : memref<1x256xf32, #tpu.memory_space<vmem>>, vector<1x256xf32>
    %33 = vector.broadcast %32 : vector<1x256xf32> to vector<32x256xf32>
    %34 = arith.addf %31, %33 : vector<32x256xf32>
    %c0_31 = arith.constant 0 : index
    %c0_32 = arith.constant 0 : index
    %35 = vector.load %arg19[%c0_31, %c0_32] : memref<32x256xf32, #tpu.memory_space<vmem>>, vector<32x256xf32>
    tpu.vector_store %arg19[%c0_31, %c0_32], %34 {strides = array<i32>} : memref<32x256xf32, #tpu.memory_space<vmem>>, vector<32x256xf32>,
    %c0_33 = arith.constant 0 : index
    %c0_34 = arith.constant 0 : index
    %36 = vector.load %arg14[%c0_33, %c0_34] : memref<128x128xf32, #tpu.memory_space<vmem>>, vector<128x128xf32>
    %cst_35 = arith.constant dense<0.000000e+00> : vector<2x128xf32>
    %37 = tpu.matmul %23, %36, %cst_35 {dimension_numbers = #tpu.dot_dimension_numbers<[1], [0], [0], [1], [0, 0, 1, 1], [], []>} : vector<2x128xf32>, vector<128x128xf32>, vector<2x128xf32> -> vector<2x128xf32>
    %c0_36 = arith.constant 0 : index
    %c0_37 = arith.constant 0 : index
    %38 = vector.load %arg15[%c0_36, %c0_37] : memref<1x128xf32, #tpu.memory_space<vmem>>, vector<1x128xf32>
    %39 = vector.broadcast %38 : vector<1x128xf32> to vector<2x128xf32>
    %40 = arith.addf %37, %39 : vector<2x128xf32>
    %41 = math.tanh %40 : vector<2x128xf32>
    %c0_38 = arith.constant 0 : index
    %c0_39 = arith.constant 0 : index
    %42 = vector.load %arg16[%c0_38, %c0_39] : memref<128x128xf32, #tpu.memory_space<vmem>>, vector<128x128xf32>
    %cst_40 = arith.constant dense<0.000000e+00> : vector<2x128xf32>
    %43 = tpu.matmul %41, %42, %cst_40 {dimension_numbers = #tpu.dot_dimension_numbers<[1], [0], [0], [1], [0, 0, 1, 1], [], []>} : vector<2x128xf32>, vector<128x128xf32>, vector<2x128xf32> -> vector<2x128xf32>
    %c0_41 = arith.constant 0 : index
    %c0_42 = arith.constant 0 : index
    %44 = vector.load %arg17[%c0_41, %c0_42] : memref<1x128xf32, #tpu.memory_space<vmem>>, vector<1x128xf32>
    %45 = vector.broadcast %44 : vector<1x128xf32> to vector<2x128xf32>
    %46 = arith.addf %43, %45 : vector<2x128xf32>
    %c0_43 = arith.constant 0 : index
    %c0_44 = arith.constant 0 : index
    %47 = vector.load %arg20[%c0_43, %c0_44] : memref<2x128xf32, #tpu.memory_space<vmem>>, vector<2x128xf32>
    tpu.vector_store %arg20[%c0_43, %c0_44], %46 {strides = array<i32>} : memref<2x128xf32, #tpu.memory_space<vmem>>, vector<2x128xf32>,
    return
  }
  func.func @transform_0(%arg0: i32) -> (i32, i32) {
    %c0_i32 = arith.constant 0 : i32
    %c0_i32_0 = arith.constant 0 : i32
    %c0_i32_1 = arith.constant 0 : i32
    return %c0_i32, %c0_i32_0 : i32, i32
  }
  func.func @transform_1(%arg0: i32) -> (i32, i32) {
    %c0_i32 = arith.constant 0 : i32
    %c0_i32_0 = arith.constant 0 : i32
    %c0_i32_1 = arith.constant 0 : i32
    return %c0_i32, %c0_i32_0 : i32, i32
  }
  func.func @transform_2(%arg0: i32) -> (i32, i32) {
    %c0_i32 = arith.constant 0 : i32
    %c0_i32_0 = arith.constant 0 : i32
    %c0_i32_1 = arith.constant 0 : i32
    return %c0_i32, %c0_i32_0 : i32, i32
  }
  func.func @transform_3(%arg0: i32) -> (i32, i32) {
    %c0_i32 = arith.constant 0 : i32
    %c0_i32_0 = arith.constant 0 : i32
    %c0_i32_1 = arith.constant 0 : i32
    return %c0_i32, %c0_i32_0 : i32, i32
  }
  func.func @transform_4(%arg0: i32) -> (i32, i32) {
    %c0_i32 = arith.constant 0 : i32
    %c0_i32_0 = arith.constant 0 : i32
    %c0_i32_1 = arith.constant 0 : i32
    return %c0_i32, %c0_i32_0 : i32, i32
  }
  func.func @transform_5(%arg0: i32) -> (i32, i32) {
    %c0_i32 = arith.constant 0 : i32
    %c0_i32_0 = arith.constant 0 : i32
    %c0_i32_1 = arith.constant 0 : i32
    return %c0_i32, %c0_i32_0 : i32, i32
  }
  func.func @transform_6(%arg0: i32) -> (i32, i32) {
    %c0_i32 = arith.constant 0 : i32
    %c0_i32_0 = arith.constant 0 : i32
    %c0_i32_1 = arith.constant 0 : i32
    return %c0_i32, %c0_i32_0 : i32, i32
  }
  func.func @transform_7(%arg0: i32) -> (i32, i32) {
    %c0_i32 = arith.constant 0 : i32
    %c0_i32_0 = arith.constant 0 : i32
    %c0_i32_1 = arith.constant 0 : i32
    return %c0_i32, %c0_i32_0 : i32, i32
  }
  func.func @transform_8(%arg0: i32) -> (i32, i32) {
    %c0_i32 = arith.constant 0 : i32
    %c0_i32_0 = arith.constant 0 : i32
    %c0_i32_1 = arith.constant 0 : i32
    return %c0_i32, %c0_i32_0 : i32, i32
  }
  func.func @transform_9(%arg0: i32) -> (i32, i32) {
    %c0_i32 = arith.constant 0 : i32
    %c0_i32_0 = arith.constant 0 : i32
    %c0_i32_1 = arith.constant 0 : i32
    return %c0_i32, %c0_i32_0 : i32, i32
  }
  func.func @transform_10(%arg0: i32) -> (i32, i32) {
    %c0_i32 = arith.constant 0 : i32
    %c0_i32_0 = arith.constant 0 : i32
    %c0_i32_1 = arith.constant 0 : i32
    return %c0_i32, %c0_i32_0 : i32, i32
  }
  func.func @transform_11(%arg0: i32) -> (i32, i32) {
    %c0_i32 = arith.constant 0 : i32
    %c0_i32_0 = arith.constant 0 : i32
    %c0_i32_1 = arith.constant 0 : i32
    return %c0_i32, %c0_i32_0 : i32, i32
  }
  func.func @transform_12(%arg0: i32) -> (i32, i32) {
    %c0_i32 = arith.constant 0 : i32
    %c0_i32_0 = arith.constant 0 : i32
    %c0_i32_1 = arith.constant 0 : i32
    return %c0_i32, %c0_i32_0 : i32, i32
  }
  func.func @transform_13(%arg0: i32) -> (i32, i32) {
    %c0_i32 = arith.constant 0 : i32
    %c0_i32_0 = arith.constant 0 : i32
    %c0_i32_1 = arith.constant 0 : i32
    return %c0_i32, %c0_i32_0 : i32, i32
  }
  func.func @transform_14(%arg0: i32) -> (i32, i32) {
    %c0_i32 = arith.constant 0 : i32
    %c0_i32_0 = arith.constant 0 : i32
    %c0_i32_1 = arith.constant 0 : i32
    return %c0_i32, %c0_i32_0 : i32, i32
  }
  func.func @transform_15(%arg0: i32) -> (i32, i32) {
    %c0_i32 = arith.constant 0 : i32
    %c0_i32_0 = arith.constant 0 : i32
    %c0_i32_1 = arith.constant 0 : i32
    return %c0_i32, %c0_i32_0 : i32, i32
  }
  func.func @transform_16(%arg0: i32) -> (i32, i32) {
    %c0_i32 = arith.constant 0 : i32
    %c0_i32_0 = arith.constant 0 : i32
    %c0_i32_1 = arith.constant 0 : i32
    return %c0_i32, %c0_i32_0 : i32, i32
  }
  func.func @transform_17(%arg0: i32) -> (i32, i32) {
    %c0_i32 = arith.constant 0 : i32
    %c0_i32_0 = arith.constant 0 : i32
    %c0_i32_1 = arith.constant 0 : i32
    return %c0_i32, %c0_i32_0 : i32, i32
  }
  func.func @transform_18(%arg0: i32) -> (i32, i32) {
    %c0_i32 = arith.constant 0 : i32
    %c0_i32_0 = arith.constant 0 : i32
    %c0_i32_1 = arith.constant 0 : i32
    return %c0_i32, %c0_i32_0 : i32, i32
  }
  func.func @transform_19(%arg0: i32) -> (i32, i32) {
    %c0_i32 = arith.constant 0 : i32
    %c0_i32_0 = arith.constant 0 : i32
    %c0_i32_1 = arith.constant 0 : i32
    return %c0_i32, %c0_i32_0 : i32, i32
  }
}

</mosaic_0001>

<llo_original>
// kernel: _lambda_.1
$region0: #{_lambda_.1}
  #allocation0 [shape = 'u32[]', space=smem, size = 0x4, offset = 0x4, fixed_abs, tag = 'smem constant byte address 0x4 - core index']
  #allocation1 [shape = 'u32[72,128]{1,0:T(1,128)}', space=vmem, size = 0x9000, scoped, tag = 'internal scratch']
  %s0 = inlined_call_operand.vmem [shape: s32[16,1], index: 0, kind: input, shape index: {}]
  %s1 = inlined_call_operand.vmem [shape: f32[16,256], index: 1, kind: input, shape index: {}, may-alias: {1,17}]
  %s2 = inlined_call_operand.vmem [shape: f32[1,256], index: 2, kind: input, shape index: {}]
  %s3 = inlined_call_operand.vmem [shape: f32[32,128], index: 3, kind: input, shape index: {}]
  %s4 = inlined_call_operand.vmem [shape: f32[128,256], index: 4, kind: input, shape index: {}]
  %s5 = inlined_call_operand.vmem [shape: f32[1,256], index: 5, kind: input, shape index: {}]
  %s6 = inlined_call_operand.vmem [shape: f32[2,32], index: 6, kind: input, shape index: {}]
  %s7 = inlined_call_operand.vmem [shape: f32[256,128], index: 7, kind: input, shape index: {}]
  %s8 = inlined_call_operand.vmem [shape: f32[1,128], index: 8, kind: input, shape index: {}]
  %s9 = inlined_call_operand.vmem [shape: f32[256,128], index: 9, kind: input, shape index: {}]
  %s10 = inlined_call_operand.vmem [shape: f32[1,128], index: 10, kind: input, shape index: {}]
  %s11 = inlined_call_operand.vmem [shape: f32[128,256], index: 11, kind: input, shape index: {}]
  %s12 = inlined_call_operand.vmem [shape: f32[1,256], index: 12, kind: input, shape index: {}]
  %s13 = inlined_call_operand.vmem [shape: f32[128,128], index: 13, kind: input, shape index: {}]
  %s14 = inlined_call_operand.vmem [shape: f32[1,128], index: 14, kind: input, shape index: {}]
  %s15 = inlined_call_operand.vmem [shape: f32[128,128], index: 15, kind: input, shape index: {}]
  %s16 = inlined_call_operand.vmem [shape: f32[1,128], index: 16, kind: input, shape index: {}]
  %s17 = inlined_call_operand.vmem [shape: f32[16,256], index: 17, kind: output, shape index: {0}, may-alias: {1,17}]
  %s18 = inlined_call_operand.hbm [shape: f32[32,256], index: 18, kind: output, shape index: {1}]
  %s19 = inlined_call_operand.hbm [shape: f32[2,128], index: 19, kind: output, shape index: {2}]
  %20 = xla_tuple %s17, %s18, %s19
  %s21 = sld [smem:[#allocation0]]
  $region94: #{_lambda_.1} parent=0
    _
  %s23 = ssub.s32 1, %s21
  %s24 = scalar_select 0, %s23, %s21
  $region1: #{_lambda_.1} parent=0
    #allocation2 [shape = 'u8[32768]{0}', space=vmem, size = 0x8000, scoped, tag = 'output window, operand 1, single buffered']
    #allocation3 [shape = 's32[1]{0}', space=sflag, size = 0x4, scoped, tag = 'scoped memory for _lambda_.1']
    #allocation4 [shape = 'u8[1024]{0}', space=vmem, size = 0x400, scoped, tag = 'output window, operand 2, single buffered']
    #allocation5 [shape = 's32[1]{0}', space=sflag, size = 0x4, scoped, tag = 'scoped memory for _lambda_.1']
    %25 = vsyncpa [#allocation3], 0
    %26 = vsyncpa [#allocation5], 0
    // Predicated region
    $region2: #{_lambda_.1} parent=1 // pred_check
      _
    $region3: #{_lambda_.1} parent=1 // pred_check_branch
      %28 = sbr.rel (0) target = $region5
    $region4: #{_lambda_.1} parent=1 // pred_region
      _
    $region5: #{_lambda_.1} parent=1 // pred_fallthru
      _
    // Predicated region
    $region6: #{_lambda_.1} parent=1 // pred_check
      _
    $region7: #{_lambda_.1} parent=1 // pred_check_branch
      %30 = sbr.rel (0) target = $region9
    $region8: #{_lambda_.1} parent=1 // pred_region
      _
    $region9: #{_lambda_.1} parent=1 // pred_fallthru
      _
    // Predicated region
    $region10: #{_lambda_.1} parent=1 // pred_check
      _
    $region11: #{_lambda_.1} parent=1 // pred_check_branch
      %32 = sbr.rel (0) target = $region13
    $region12: #{_lambda_.1} parent=1 // pred_region
      _
    $region13: #{_lambda_.1} parent=1 // pred_fallthru
      _
    // Predicated region
    $region14: #{_lambda_.1} parent=1 // pred_check
      _
    $region15: #{_lambda_.1} parent=1 // pred_check_branch
      %34 = sbr.rel (0) target = $region17
    $region16: #{_lambda_.1} parent=1 // pred_region
      _
    $region17: #{_lambda_.1} parent=1 // pred_fallthru
      _
    // Predicated region
    $region18: #{_lambda_.1} parent=1 // pred_check
      _
    $region19: #{_lambda_.1} parent=1 // pred_check_branch
      %36 = sbr.rel (0) target = $region21
    $region20: #{_lambda_.1} parent=1 // pred_region
      _
    $region21: #{_lambda_.1} parent=1 // pred_fallthru
      _
    // Predicated region
    $region22: #{_lambda_.1} parent=1 // pred_check
      _
    $region23: #{_lambda_.1} parent=1 // pred_check_branch
      %38 = sbr.rel (0) target = $region25
    $region24: #{_lambda_.1} parent=1 // pred_region
      _
    $region25: #{_lambda_.1} parent=1 // pred_fallthru
      _
    // Predicated region
    $region26: #{_lambda_.1} parent=1 // pred_check
      _
    $region27: #{_lambda_.1} parent=1 // pred_check_branch
      %40 = sbr.rel (0) target = $region29
    $region28: #{_lambda_.1} parent=1 // pred_region
      _
    $region29: #{_lambda_.1} parent=1 // pred_fallthru
      _
    // Predicated region
    $region30: #{_lambda_.1} parent=1 // pred_check
      _
    $region31: #{_lambda_.1} parent=1 // pred_check_branch
      %42 = sbr.rel (0) target = $region33
    $region32: #{_lambda_.1} parent=1 // pred_region
      _
    $region33: #{_lambda_.1} parent=1 // pred_fallthru
      _
    // Predicated region
    $region34: #{_lambda_.1} parent=1 // pred_check
      _
    $region35: #{_lambda_.1} parent=1 // pred_check_branch
      %44 = sbr.rel (0) target = $region37
    $region36: #{_lambda_.1} parent=1 // pred_region
      _
    $region37: #{_lambda_.1} parent=1 // pred_fallthru
      _
    // Predicated region
    $region38: #{_lambda_.1} parent=1 // pred_check
      _
    $region39: #{_lambda_.1} parent=1 // pred_check_branch
      %46 = sbr.rel (0) target = $region41
    $region40: #{_lambda_.1} parent=1 // pred_region
      _
    $region41: #{_lambda_.1} parent=1 // pred_fallthru
      _
    // Predicated region
    $region42: #{_lambda_.1} parent=1 // pred_check
      _
    $region43: #{_lambda_.1} parent=1 // pred_check_branch
      %48 = sbr.rel (0) target = $region45
    $region44: #{_lambda_.1} parent=1 // pred_region
      _
    $region45: #{_lambda_.1} parent=1 // pred_fallthru
      _
    // Predicated region
    $region46: #{_lambda_.1} parent=1 // pred_check
      _
    $region47: #{_lambda_.1} parent=1 // pred_check_branch
      %50 = sbr.rel (0) target = $region49
    $region48: #{_lambda_.1} parent=1 // pred_region
      _
    $region49: #{_lambda_.1} parent=1 // pred_fallthru
      _
    // Predicated region
    $region50: #{_lambda_.1} parent=1 // pred_check
      _
    $region51: #{_lambda_.1} parent=1 // pred_check_branch
      %52 = sbr.rel (0) target = $region53
    $region52: #{_lambda_.1} parent=1 // pred_region
      _
    $region53: #{_lambda_.1} parent=1 // pred_fallthru
      _
    // Predicated region
    $region54: #{_lambda_.1} parent=1 // pred_check
      _
    $region55: #{_lambda_.1} parent=1 // pred_check_branch
      %54 = sbr.rel (0) target = $region57
    $region56: #{_lambda_.1} parent=1 // pred_region
      _
    $region57: #{_lambda_.1} parent=1 // pred_fallthru
      _
    // Predicated region
    $region58: #{_lambda_.1} parent=1 // pred_check
      _
    $region59: #{_lambda_.1} parent=1 // pred_check_branch
      %56 = sbr.rel (0) target = $region61
    $region60: #{_lambda_.1} parent=1 // pred_region
      _
    $region61: #{_lambda_.1} parent=1 // pred_fallthru
      _
    // Predicated region
    $region62: #{_lambda_.1} parent=1 // pred_check
      _
    $region63: #{_lambda_.1} parent=1 // pred_check_branch
      %58 = sbr.rel (0) target = $region65
    $region64: #{_lambda_.1} parent=1 // pred_region
      _
    $region65: #{_lambda_.1} parent=1 // pred_fallthru
      _
    // Predicated region
    $region66: #{_lambda_.1} parent=1 // pred_check
      _
    $region67: #{_lambda_.1} parent=1 // pred_check_branch
      %60 = sbr.rel (0) target = $region69
    $region68: #{_lambda_.1} parent=1 // pred_region
      _
    $region69: #{_lambda_.1} parent=1 // pred_fallthru
      _
    %v61 = vld [vmem:[%s0] sm:$0xff]
    %v62 = vld [vmem:[%s0 + $0x8] sm:$0xff]
    %vm63 = vcmp.ne.s32.totalorder %v61, 0
    %vm64 = vcmp.ne.s32.totalorder %v62, 0
    %v65 = vld [vmem:[%s2] sm:$0x3]
    %v66 = vld [vmem:[%s1] sm:$0xff]
    %v67 = vld [vmem:[%s1 + $0x8] sm:$0xff]
    %v68 = vld [vmem:[%s1 + $0x10] sm:$0xff]
    %v69 = vld [vmem:[%s1 + $0x18] sm:$0xff]
    %v70 = vsel %vm63, 1, 0
    %v71 = vsel %vm64, 1, 0
    %72 = vset.pattern.permute.xlu0 0
    %73 = vperm.xlu0 %72, %v70
    %v74 = vpop.permute.xlu0 %73
    %75 = vset.pattern.permute.xlu0 0
    %76 = vperm.xlu0 %75, %v71
    %v77 = vpop.permute.xlu0 %76
    %vm78 = vcmp.eq.s32.totalorder %v74, 1
    %vm79 = vcmp.eq.s32.totalorder %v77, 1
    %v81 = vperm.slane %v65, 0
    %v82 = vperm.slane %v65, 1
    %v85 = vsel %vm78, %v81, %v66
    %v86 = vsel %vm78, %v82, %v67
    %v87 = vsel %vm79, %v81, %v68
    %v88 = vsel %vm79, %v82, %v69
    %89 = vst [vmem:[%s17] sm:$0xff] %v85
    %90 = vst [vmem:[%s17 + $0x8] sm:$0xff] %v86
    %91 = vst [vmem:[%s17 + $0x10] sm:$0xff] %v87
    %92 = vst [vmem:[%s17 + $0x18] sm:$0xff] %v88
    %v93 = vld [vmem:[%s3] sm:$0xff]
    %v94 = vld [vmem:[%s3 + $0x8] sm:$0xff]
    %v95 = vld [vmem:[%s3 + $0x10] sm:$0xff]
    %v96 = vld [vmem:[%s3 + $0x18] sm:$0xff]
    %v97 = vld [vmem:[%s4] sm:$0xff]
    %v98 = vld [vmem:[%s4 + $0x8] sm:$0xff]
    %v99 = vld [vmem:[%s4 + $0x10] sm:$0xff]
    %v100 = vld [vmem:[%s4 + $0x18] sm:$0xff]
    %v101 = vld [vmem:[%s4 + $0x20] sm:$0xff]
    %v102 = vld [vmem:[%s4 + $0x28] sm:$0xff]
    %v103 = vld [vmem:[%s4 + $0x30] sm:$0xff]
    %v104 = vld [vmem:[%s4 + $0x38] sm:$0xff]
    %v105 = vld [vmem:[%s4 + $0x40] sm:$0xff]
    %v106 = vld [vmem:[%s4 + $0x48] sm:$0xff]
    %v107 = vld [vmem:[%s4 + $0x50] sm:$0xff]
    %v108 = vld [vmem:[%s4 + $0x58] sm:$0xff]
    %v109 = vld [vmem:[%s4 + $0x60] sm:$0xff]
    %v110 = vld [vmem:[%s4 + $0x68] sm:$0xff]
    %v111 = vld [vmem:[%s4 + $0x70] sm:$0xff]
    %v112 = vld [vmem:[%s4 + $0x78] sm:$0xff]
    %v113 = vld [vmem:[%s4 + $0x80] sm:$0xff]
    %v114 = vld [vmem:[%s4 + $0x88] sm:$0xff]
    %v115 = vld [vmem:[%s4 + $0x90] sm:$0xff]
    %v116 = vld [vmem:[%s4 + $0x98] sm:$0xff]
    %v117 = vld [vmem:[%s4 + $0xa0] sm:$0xff]
    %v118 = vld [vmem:[%s4 + $0xa8] sm:$0xff]
    %v119 = vld [vmem:[%s4 + $0xb0] sm:$0xff]
    %v120 = vld [vmem:[%s4 + $0xb8] sm:$0xff]
    %v121 = vld [vmem:[%s4 + $0xc0] sm:$0xff]
    %v122 = vld [vmem:[%s4 + $0xc8] sm:$0xff]
    %v123 = vld [vmem:[%s4 + $0xd0] sm:$0xff]
    %v124 = vld [vmem:[%s4 + $0xd8] sm:$0xff]
    %v125 = vld [vmem:[%s4 + $0xe0] sm:$0xff]
    %v126 = vld [vmem:[%s4 + $0xe8] sm:$0xff]
    %v127 = vld [vmem:[%s4 + $0xf0] sm:$0xff]
    %v128 = vld [vmem:[%s4 + $0xf8] sm:$0xff]
    %v129 = vld [vmem:[%s5] sm:$0x3]
    %v131 = vperm.slane %v129, 0
    %v132 = vperm.slane %v129, 1
    %135 = vmatpush.msra.mxu0 %v127
    %136 = vmatpush.msra.mxu0 %v125
    %137 = vmatpush.msra.mxu0 %v123
    %138 = vmatpush.msra.mxu0 %v121
    %139 = vmatpush.msra.mxu0 %v119
    %140 = vmatpush.msra.mxu0 %v117
    %141 = vmatpush.msra.mxu0 %v115
    %142 = vmatpush.msra.mxu0 %v113
    %143 = vmatpush.msra.mxu0 %v111
    %144 = vmatpush.msra.mxu0 %v109
    %145 = vmatpush.msra.mxu0 %v107
    %146 = vmatpush.msra.mxu0 %v105
    %147 = vmatpush.msra.mxu0 %v103
    %148 = vmatpush.msra.mxu0 %v101
    %149 = vmatpush.msra.mxu0 %v99
    %150 = vmatpush.msra.mxu0 %v97
    %151 = vmatmul.f32.gmra.mxu0 %v93
    %v152 = vpop.f32.mrf.mxu0
    %v153 = vadd.f32 %v131, %v152
    %154 = vmatmul.f32.gmra.mxu0 %v94
    %v155 = vpop.f32.mrf.mxu0
    %v156 = vadd.f32 %v131, %v155
    %157 = vmatmul.f32.gmra.mxu0 %v95
    %v158 = vpop.f32.mrf.mxu0
    %v159 = vadd.f32 %v131, %v158
    %160 = vmatmul.f32.gmra.mxu0 %v96
    %v161 = vpop.f32.mrf.mxu0
    %v162 = vadd.f32 %v131, %v161
    %163 = vdwg.mxu0
    %164 = vmatpush.msra.mxu0 %v128
    %165 = vmatpush.msra.mxu0 %v126
    %166 = vmatpush.msra.mxu0 %v124
    %167 = vmatpush.msra.mxu0 %v122
    %168 = vmatpush.msra.mxu0 %v120
    %169 = vmatpush.msra.mxu0 %v118
    %170 = vmatpush.msra.mxu0 %v116
    %171 = vmatpush.msra.mxu0 %v114
    %172 = vmatpush.msra.mxu0 %v112
    %173 = vmatpush.msra.mxu0 %v110
    %174 = vmatpush.msra.mxu0 %v108
    %175 = vmatpush.msra.mxu0 %v106
    %176 = vmatpush.msra.mxu0 %v104
    %177 = vmatpush.msra.mxu0 %v102
    %178 = vmatpush.msra.mxu0 %v100
    %179 = vmatpush.msra.mxu0 %v98
    %180 = vmatmul.f32.gmra.mxu0 %v93
    %v181 = vpop.f32.mrf.mxu0
    %v182 = vadd.f32 %v132, %v181
    %183 = vmatmul.f32.gmra.mxu0 %v94
    %v184 = vpop.f32.mrf.mxu0
    %v185 = vadd.f32 %v132, %v184
    %186 = vmatmul.f32.gmra.mxu0 %v95
    %v187 = vpop.f32.mrf.mxu0
    %v188 = vadd.f32 %v132, %v187
    %189 = vmatmul.f32.gmra.mxu0 %v96
    %v190 = vpop.f32.mrf.mxu0
    %v191 = vadd.f32 %v132, %v190
    %192 = vdwg.mxu0
    %v193 = vld [vmem:[%s6] sm:$0x3]
    %vm194 = vcmask 261120
    %v196 = vsel %vm194, %v193, 0
    %198 = vmatpush.msra.mxu0 0.0
    %199 = vmatpush.msra.mxu0 0.0
    %200 = vmatpush.msra.mxu0 0.0
    %201 = vmatpush.msra.mxu0 0.0
    %202 = vmatpush.msra.mxu0 0.0
    %203 = vmatpush.msra.mxu0 0.0
    %204 = vmatpush.msra.mxu0 0.0
    %205 = vmatpush.msra.mxu0 0.0
    %206 = vmatpush.msra.mxu0 0.0
    %207 = vmatpush.msra.mxu0 0.0
    %208 = vmatpush.msra.mxu0 0.0
    %209 = vmatpush.msra.mxu0 0.0
    %210 = vmatpush.msra.mxu0 %v162
    %211 = vmatpush.msra.mxu0 %v159
    %212 = vmatpush.msra.mxu0 %v156
    %213 = vmatpush.msra.mxu0 %v153
    %214 = vmatmul.f32.gmra.mxu0 %v196
    %v215 = vpop.f32.mrf.mxu0
    %v216 = vadd.f32 0.0, %v215
    %217 = vdwg.mxu0
    %218 = vmatpush.msra.mxu0 0.0
    %219 = vmatpush.msra.mxu0 0.0
    %220 = vmatpush.msra.mxu0 0.0
    %221 = vmatpush.msra.mxu0 0.0
    %222 = vmatpush.msra.mxu0 0.0
    %223 = vmatpush.msra.mxu0 0.0
    %224 = vmatpush.msra.mxu0 0.0
    %225 = vmatpush.msra.mxu0 0.0
    %226 = vmatpush.msra.mxu0 0.0
    %227 = vmatpush.msra.mxu0 0.0
    %228 = vmatpush.msra.mxu0 0.0
    %229 = vmatpush.msra.mxu0 0.0
    %230 = vmatpush.msra.mxu0 %v191
    %231 = vmatpush.msra.mxu0 %v188
    %232 = vmatpush.msra.mxu0 %v185
    %233 = vmatpush.msra.mxu0 %v182
    %234 = vmatmul.f32.gmra.mxu0 %v196
    %v235 = vpop.f32.mrf.mxu0
    %v236 = vadd.f32 0.0, %v235
    %237 = vdwg.mxu0
    %v238 = vld [vmem:[%s7] sm:$0xff]
    %v239 = vld [vmem:[%s7 + $0x8] sm:$0xff]
    %v240 = vld [vmem:[%s7 + $0x10] sm:$0xff]
    %v241 = vld [vmem:[%s7 + $0x18] sm:$0xff]
    %v242 = vld [vmem:[%s7 + $0x20] sm:$0xff]
    %v243 = vld [vmem:[%s7 + $0x28] sm:$0xff]
    %v244 = vld [vmem:[%s7 + $0x30] sm:$0xff]
    %v245 = vld [vmem:[%s7 + $0x38] sm:$0xff]
    %v246 = vld [vmem:[%s7 + $0x40] sm:$0xff]
    %v247 = vld [vmem:[%s7 + $0x48] sm:$0xff]
    %v248 = vld [vmem:[%s7 + $0x50] sm:$0xff]
    %v249 = vld [vmem:[%s7 + $0x58] sm:$0xff]
    %v250 = vld [vmem:[%s7 + $0x60] sm:$0xff]
    %v251 = vld [vmem:[%s7 + $0x68] sm:$0xff]
    %v252 = vld [vmem:[%s7 + $0x70] sm:$0xff]
    %v253 = vld [vmem:[%s7 + $0x78] sm:$0xff]
    %v254 = vld [vmem:[%s7 + $0x80] sm:$0xff]
    %v255 = vld [vmem:[%s7 + $0x88] sm:$0xff]
    %v256 = vld [vmem:[%s7 + $0x90] sm:$0xff]
    %v257 = vld [vmem:[%s7 + $0x98] sm:$0xff]
    %v258 = vld [vmem:[%s7 + $0xa0] sm:$0xff]
    %v259 = vld [vmem:[%s7 + $0xa8] sm:$0xff]
    %v260 = vld [vmem:[%s7 + $0xb0] sm:$0xff]
    %v261 = vld [vmem:[%s7 + $0xb8] sm:$0xff]
    %v262 = vld [vmem:[%s7 + $0xc0] sm:$0xff]
    %v263 = vld [vmem:[%s7 + $0xc8] sm:$0xff]
    %v264 = vld [vmem:[%s7 + $0xd0] sm:$0xff]
    %v265 = vld [vmem:[%s7 + $0xd8] sm:$0xff]
    %v266 = vld [vmem:[%s7 + $0xe0] sm:$0xff]
    %v267 = vld [vmem:[%s7 + $0xe8] sm:$0xff]
    %v268 = vld [vmem:[%s7 + $0xf0] sm:$0xff]
    %v269 = vld [vmem:[%s7 + $0xf8] sm:$0xff]
    %v270 = vld [vmem:[%s8] sm:$0x1]
    %v272 = vperm.slane %v270, 0
    %274 = vmatpush.msra.mxu0 %v253
    %275 = vmatpush.msra.mxu0 %v252
    %276 = vmatpush.msra.mxu0 %v251
    %277 = vmatpush.msra.mxu0 %v250
    %278 = vmatpush.msra.mxu0 %v249
    %279 = vmatpush.msra.mxu0 %v248
    %280 = vmatpush.msra.mxu0 %v247
    %281 = vmatpush.msra.mxu0 %v246
    %282 = vmatpush.msra.mxu0 %v245
    %283 = vmatpush.msra.mxu0 %v244
    %284 = vmatpush.msra.mxu0 %v243
    %285 = vmatpush.msra.mxu0 %v242
    %286 = vmatpush.msra.mxu0 %v241
    %287 = vmatpush.msra.mxu0 %v240
    %288 = vmatpush.msra.mxu0 %v239
    %289 = vmatpush.msra.mxu0 %v238
    %290 = vmatmul.f32.gmra.mxu0 %v216
    %v291 = vpop.f32.mrf.mxu0
    %v292 = vadd.f32 %v272, %v291
    %293 = vdwg.mxu0
    %294 = vmatpush.msra.mxu0 %v269
    %295 = vmatpush.msra.mxu0 %v268
    %296 = vmatpush.msra.mxu0 %v267
    %297 = vmatpush.msra.mxu0 %v266
    %298 = vmatpush.msra.mxu0 %v265
    %299 = vmatpush.msra.mxu0 %v264
    %300 = vmatpush.msra.mxu0 %v263
    %301 = vmatpush.msra.mxu0 %v262
    %302 = vmatpush.msra.mxu0 %v261
    %303 = vmatpush.msra.mxu0 %v260
    %304 = vmatpush.msra.mxu0 %v259
    %305 = vmatpush.msra.mxu0 %v258
    %306 = vmatpush.msra.mxu0 %v257
    %307 = vmatpush.msra.mxu0 %v256
    %308 = vmatpush.msra.mxu0 %v255
    %309 = vmatpush.msra.mxu0 %v254
    %310 = vmatmul.f32.gmra.mxu0 %v236
    %v311 = vpop.f32.mrf.mxu0
    %v312 = vadd.f32 %v292, %v311
    %313 = vdwg.mxu0
    %v314 = vld [vmem:[%s9] sm:$0xff]
    %v315 = vld [vmem:[%s9 + $0x8] sm:$0xff]
    %v316 = vld [vmem:[%s9 + $0x10] sm:$0xff]
    %v317 = vld [vmem:[%s9 + $0x18] sm:$0xff]
    %v318 = vld [vmem:[%s9 + $0x20] sm:$0xff]
    %v319 = vld [vmem:[%s9 + $0x28] sm:$0xff]
    %v320 = vld [vmem:[%s9 + $0x30] sm:$0xff]
    %v321 = vld [vmem:[%s9 + $0x38] sm:$0xff]
    %v322 = vld [vmem:[%s9 + $0x40] sm:$0xff]
    %v323 = vld [vmem:[%s9 + $0x48] sm:$0xff]
    %v324 = vld [vmem:[%s9 + $0x50] sm:$0xff]
    %v325 = vld [vmem:[%s9 + $0x58] sm:$0xff]
    %v326 = vld [vmem:[%s9 + $0x60] sm:$0xff]
    %v327 = vld [vmem:[%s9 + $0x68] sm:$0xff]
    %v328 = vld [vmem:[%s9 + $0x70] sm:$0xff]
    %v329 = vld [vmem:[%s9 + $0x78] sm:$0xff]
    %v330 = vld [vmem:[%s9 + $0x80] sm:$0xff]
    %v331 = vld [vmem:[%s9 + $0x88] sm:$0xff]
    %v332 = vld [vmem:[%s9 + $0x90] sm:$0xff]
    %v333 = vld [vmem:[%s9 + $0x98] sm:$0xff]
    %v334 = vld [vmem:[%s9 + $0xa0] sm:$0xff]
    %v335 = vld [vmem:[%s9 + $0xa8] sm:$0xff]
    %v336 = vld [vmem:[%s9 + $0xb0] sm:$0xff]
    %v337 = vld [vmem:[%s9 + $0xb8] sm:$0xff]
    %v338 = vld [vmem:[%s9 + $0xc0] sm:$0xff]
    %v339 = vld [vmem:[%s9 + $0xc8] sm:$0xff]
    %v340 = vld [vmem:[%s9 + $0xd0] sm:$0xff]
    %v341 = vld [vmem:[%s9 + $0xd8] sm:$0xff]
    %v342 = vld [vmem:[%s9 + $0xe0] sm:$0xff]
    %v343 = vld [vmem:[%s9 + $0xe8] sm:$0xff]
    %v344 = vld [vmem:[%s9 + $0xf0] sm:$0xff]
    %v345 = vld [vmem:[%s9 + $0xf8] sm:$0xff]
    %v346 = vld [vmem:[%s10] sm:$0x1]
    %v348 = vperm.slane %v346, 0
    %350 = vmatpush.msra.mxu0 %v329
    %351 = vmatpush.msra.mxu0 %v328
    %352 = vmatpush.msra.mxu0 %v327
    %353 = vmatpush.msra.mxu0 %v326
    %354 = vmatpush.msra.mxu0 %v325
    %355 = vmatpush.msra.mxu0 %v324
    %356 = vmatpush.msra.mxu0 %v323
    %357 = vmatpush.msra.mxu0 %v322
    %358 = vmatpush.msra.mxu0 %v321
    %359 = vmatpush.msra.mxu0 %v320
    %360 = vmatpush.msra.mxu0 %v319
    %361 = vmatpush.msra.mxu0 %v318
    %362 = vmatpush.msra.mxu0 %v317
    %363 = vmatpush.msra.mxu0 %v316
    %364 = vmatpush.msra.mxu0 %v315
    %365 = vmatpush.msra.mxu0 %v314
    %366 = vmatmul.f32.gmra.mxu0 %v153
    %v367 = vpop.f32.mrf.mxu0
    %v368 = vadd.f32 %v348, %v367
    %369 = vmatmul.f32.gmra.mxu0 %v156
    %v370 = vpop.f32.mrf.mxu0
    %v371 = vadd.f32 %v348, %v370
    %372 = vmatmul.f32.gmra.mxu0 %v159
    %v373 = vpop.f32.mrf.mxu0
    %v374 = vadd.f32 %v348, %v373
    %375 = vmatmul.f32.gmra.mxu0 %v162
    %v376 = vpop.f32.mrf.mxu0
    %v377 = vadd.f32 %v348, %v376
    %378 = vdwg.mxu0
    %379 = vmatpush.msra.mxu0 %v345
    %380 = vmatpush.msra.mxu0 %v344
    %381 = vmatpush.msra.mxu0 %v343
    %382 = vmatpush.msra.mxu0 %v342
    %383 = vmatpush.msra.mxu0 %v341
    %384 = vmatpush.msra.mxu0 %v340
    %385 = vmatpush.msra.mxu0 %v339
    %386 = vmatpush.msra.mxu0 %v338
    %387 = vmatpush.msra.mxu0 %v337
    %388 = vmatpush.msra.mxu0 %v336
    %389 = vmatpush.msra.mxu0 %v335
    %390 = vmatpush.msra.mxu0 %v334
    %391 = vmatpush.msra.mxu0 %v333
    %392 = vmatpush.msra.mxu0 %v332
    %393 = vmatpush.msra.mxu0 %v331
    %394 = vmatpush.msra.mxu0 %v330
    %395 = vmatmul.f32.gmra.mxu0 %v182
    %v396 = vpop.f32.mrf.mxu0
    %v397 = vadd.f32 %v368, %v396
    %398 = vmatmul.f32.gmra.mxu0 %v185
    %v399 = vpop.f32.mrf.mxu0
    %v400 = vadd.f32 %v371, %v399
    %401 = vmatmul.f32.gmra.mxu0 %v188
    %v402 = vpop.f32.mrf.mxu0
    %v403 = vadd.f32 %v374, %v402
    %404 = vmatmul.f32.gmra.mxu0 %v191
    %v405 = vpop.f32.mrf.mxu0
    %v406 = vadd.f32 %v377, %v405
    %407 = vdwg.mxu0
    %v408 = vtanh.pop %v397
    %v409 = vtanh.pop %v400
    %v410 = vtanh.pop %v403
    %v411 = vtanh.pop %v406
    %v412 = vld [vmem:[%s11] sm:$0xff]
    %v413 = vld [vmem:[%s11 + $0x8] sm:$0xff]
    %v414 = vld [vmem:[%s11 + $0x10] sm:$0xff]
    %v415 = vld [vmem:[%s11 + $0x18] sm:$0xff]
    %v416 = vld [vmem:[%s11 + $0x20] sm:$0xff]
    %v417 = vld [vmem:[%s11 + $0x28] sm:$0xff]
    %v418 = vld [vmem:[%s11 + $0x30] sm:$0xff]
    %v419 = vld [vmem:[%s11 + $0x38] sm:$0xff]
    %v420 = vld [vmem:[%s11 + $0x40] sm:$0xff]
    %v421 = vld [vmem:[%s11 + $0x48] sm:$0xff]
    %v422 = vld [vmem:[%s11 + $0x50] sm:$0xff]
    %v423 = vld [vmem:[%s11 + $0x58] sm:$0xff]
    %v424 = vld [vmem:[%s11 + $0x60] sm:$0xff]
    %v425 = vld [vmem:[%s11 + $0x68] sm:$0xff]
    %v426 = vld [vmem:[%s11 + $0x70] sm:$0xff]
    %v427 = vld [vmem:[%s11 + $0x78] sm:$0xff]
    %v428 = vld [vmem:[%s11 + $0x80] sm:$0xff]
    %v429 = vld [vmem:[%s11 + $0x88] sm:$0xff]
    %v430 = vld [vmem:[%s11 + $0x90] sm:$0xff]
    %v431 = vld [vmem:[%s11 + $0x98] sm:$0xff]
    %v432 = vld [vmem:[%s11 + $0xa0] sm:$0xff]
    %v433 = vld [vmem:[%s11 + $0xa8] sm:$0xff]
    %v434 = vld [vmem:[%s11 + $0xb0] sm:$0xff]
    %v435 = vld [vmem:[%s11 + $0xb8] sm:$0xff]
    %v436 = vld [vmem:[%s11 + $0xc0] sm:$0xff]
    %v437 = vld [vmem:[%s11 + $0xc8] sm:$0xff]
    %v438 = vld [vmem:[%s11 + $0xd0] sm:$0xff]
    %v439 = vld [vmem:[%s11 + $0xd8] sm:$0xff]
    %v440 = vld [vmem:[%s11 + $0xe0] sm:$0xff]
    %v441 = vld [vmem:[%s11 + $0xe8] sm:$0xff]
    %v442 = vld [vmem:[%s11 + $0xf0] sm:$0xff]
    %v443 = vld [vmem:[%s11 + $0xf8] sm:$0xff]
    %v444 = vld [vmem:[%s12] sm:$0x3]
    %v446 = vperm.slane %v444, 0
    %v447 = vperm.slane %v444, 1
    %450 = vmatpush.msra.mxu0 %v442
    %451 = vmatpush.msra.mxu0 %v440
    %452 = vmatpush.msra.mxu0 %v438
    %453 = vmatpush.msra.mxu0 %v436
    %454 = vmatpush.msra.mxu0 %v434
    %455 = vmatpush.msra.mxu0 %v432
    %456 = vmatpush.msra.mxu0 %v430
    %457 = vmatpush.msra.mxu0 %v428
    %458 = vmatpush.msra.mxu0 %v426
    %459 = vmatpush.msra.mxu0 %v424
    %460 = vmatpush.msra.mxu0 %v422
    %461 = vmatpush.msra.mxu0 %v420
    %462 = vmatpush.msra.mxu0 %v418
    %463 = vmatpush.msra.mxu0 %v416
    %464 = vmatpush.msra.mxu0 %v414
    %465 = vmatpush.msra.mxu0 %v412
    %466 = vmatmul.f32.gmra.mxu0 %v408
    %v467 = vpop.f32.mrf.mxu0
    %v468 = vadd.f32 %v446, %v467
    %469 = vmatmul.f32.gmra.mxu0 %v409
    %v470 = vpop.f32.mrf.mxu0
    %v471 = vadd.f32 %v446, %v470
    %472 = vmatmul.f32.gmra.mxu0 %v410
    %v473 = vpop.f32.mrf.mxu0
    %v474 = vadd.f32 %v446, %v473
    %475 = vmatmul.f32.gmra.mxu0 %v411
    %v476 = vpop.f32.mrf.mxu0
    %v477 = vadd.f32 %v446, %v476
    %478 = vdwg.mxu0
    %479 = vmatpush.msra.mxu0 %v443
    %480 = vmatpush.msra.mxu0 %v441
    %481 = vmatpush.msra.mxu0 %v439
    %482 = vmatpush.msra.mxu0 %v437
    %483 = vmatpush.msra.mxu0 %v435
    %484 = vmatpush.msra.mxu0 %v433
    %485 = vmatpush.msra.mxu0 %v431
    %486 = vmatpush.msra.mxu0 %v429
    %487 = vmatpush.msra.mxu0 %v427
    %488 = vmatpush.msra.mxu0 %v425
    %489 = vmatpush.msra.mxu0 %v423
    %490 = vmatpush.msra.mxu0 %v421
    %491 = vmatpush.msra.mxu0 %v419
    %492 = vmatpush.msra.mxu0 %v417
    %493 = vmatpush.msra.mxu0 %v415
    %494 = vmatpush.msra.mxu0 %v413
    %495 = vmatmul.f32.gmra.mxu0 %v408
    %v496 = vpop.f32.mrf.mxu0
    %v497 = vadd.f32 %v447, %v496
    %498 = vmatmul.f32.gmra.mxu0 %v409
    %v499 = vpop.f32.mrf.mxu0
    %v500 = vadd.f32 %v447, %v499
    %501 = vmatmul.f32.gmra.mxu0 %v410
    %v502 = vpop.f32.mrf.mxu0
    %v503 = vadd.f32 %v447, %v502
    %504 = vmatmul.f32.gmra.mxu0 %v411
    %v505 = vpop.f32.mrf.mxu0
    %v506 = vadd.f32 %v447, %v505
    %507 = vdwg.mxu0
    %508 = vst [vmem:[#allocation2] sm:$0xff] %v468
    %509 = vst [vmem:[#allocation2 + $0x8] sm:$0xff] %v497
    %510 = vst [vmem:[#allocation2 + $0x10] sm:$0xff] %v471
    %511 = vst [vmem:[#allocation2 + $0x18] sm:$0xff] %v500
    %512 = vst [vmem:[#allocation2 + $0x20] sm:$0xff] %v474
    %513 = vst [vmem:[#allocation2 + $0x28] sm:$0xff] %v503
    %514 = vst [vmem:[#allocation2 + $0x30] sm:$0xff] %v477
    %515 = vst [vmem:[#allocation2 + $0x38] sm:$0xff] %v506
    %v516 = vld [vmem:[%s13] sm:$0xff]
    %v517 = vld [vmem:[%s13 + $0x8] sm:$0xff]
    %v518 = vld [vmem:[%s13 + $0x10] sm:$0xff]
    %v519 = vld [vmem:[%s13 + $0x18] sm:$0xff]
    %v520 = vld [vmem:[%s13 + $0x20] sm:$0xff]
    %v521 = vld [vmem:[%s13 + $0x28] sm:$0xff]
    %v522 = vld [vmem:[%s13 + $0x30] sm:$0xff]
    %v523 = vld [vmem:[%s13 + $0x38] sm:$0xff]
    %v524 = vld [vmem:[%s13 + $0x40] sm:$0xff]
    %v525 = vld [vmem:[%s13 + $0x48] sm:$0xff]
    %v526 = vld [vmem:[%s13 + $0x50] sm:$0xff]
    %v527 = vld [vmem:[%s13 + $0x58] sm:$0xff]
    %v528 = vld [vmem:[%s13 + $0x60] sm:$0xff]
    %v529 = vld [vmem:[%s13 + $0x68] sm:$0xff]
    %v530 = vld [vmem:[%s13 + $0x70] sm:$0xff]
    %v531 = vld [vmem:[%s13 + $0x78] sm:$0xff]
    %v532 = vld [vmem:[%s14] sm:$0x1]
    %v534 = vperm.slane %v532, 0
    %536 = vmatpush.msra.mxu0 %v531
    %537 = vmatpush.msra.mxu0 %v530
    %538 = vmatpush.msra.mxu0 %v529
    %539 = vmatpush.msra.mxu0 %v528
    %540 = vmatpush.msra.mxu0 %v527
    %541 = vmatpush.msra.mxu0 %v526
    %542 = vmatpush.msra.mxu0 %v525
    %543 = vmatpush.msra.mxu0 %v524
    %544 = vmatpush.msra.mxu0 %v523
    %545 = vmatpush.msra.mxu0 %v522
    %546 = vmatpush.msra.mxu0 %v521
    %547 = vmatpush.msra.mxu0 %v520
    %548 = vmatpush.msra.mxu0 %v519
    %549 = vmatpush.msra.mxu0 %v518
    %550 = vmatpush.msra.mxu0 %v517
    %551 = vmatpush.msra.mxu0 %v516
    %552 = vmatmul.f32.gmra.mxu0 %v312
    %v553 = vpop.f32.mrf.mxu0
    %v554 = vadd.f32 %v534, %v553
    %555 = vdwg.mxu0
    %v556 = vtanh.pop %v554
    %v557 = vld [vmem:[%s15] sm:$0xff]
    %v558 = vld [vmem:[%s15 + $0x8] sm:$0xff]
    %v559 = vld [vmem:[%s15 + $0x10] sm:$0xff]
    %v560 = vld [vmem:[%s15 + $0x18] sm:$0xff]
    %v561 = vld [vmem:[%s15 + $0x20] sm:$0xff]
    %v562 = vld [vmem:[%s15 + $0x28] sm:$0xff]
    %v563 = vld [vmem:[%s15 + $0x30] sm:$0xff]
    %v564 = vld [vmem:[%s15 + $0x38] sm:$0xff]
    %v565 = vld [vmem:[%s15 + $0x40] sm:$0xff]
    %v566 = vld [vmem:[%s15 + $0x48] sm:$0xff]
    %v567 = vld [vmem:[%s15 + $0x50] sm:$0xff]
    %v568 = vld [vmem:[%s15 + $0x58] sm:$0xff]
    %v569 = vld [vmem:[%s15 + $0x60] sm:$0xff]
    %v570 = vld [vmem:[%s15 + $0x68] sm:$0xff]
    %v571 = vld [vmem:[%s15 + $0x70] sm:$0xff]
    %v572 = vld [vmem:[%s15 + $0x78] sm:$0xff]
    %v573 = vld [vmem:[%s16] sm:$0x1]
    %v575 = vperm.slane %v573, 0
    %577 = vmatpush.msra.mxu0 %v572
    %578 = vmatpush.msra.mxu0 %v571
    %579 = vmatpush.msra.mxu0 %v570
    %580 = vmatpush.msra.mxu0 %v569
    %581 = vmatpush.msra.mxu0 %v568
    %582 = vmatpush.msra.mxu0 %v567
    %583 = vmatpush.msra.mxu0 %v566
    %584 = vmatpush.msra.mxu0 %v565
    %585 = vmatpush.msra.mxu0 %v564
    %586 = vmatpush.msra.mxu0 %v563
    %587 = vmatpush.msra.mxu0 %v562
    %588 = vmatpush.msra.mxu0 %v561
    %589 = vmatpush.msra.mxu0 %v560
    %590 = vmatpush.msra.mxu0 %v559
    %591 = vmatpush.msra.mxu0 %v558
    %592 = vmatpush.msra.mxu0 %v557
    %593 = vmatmul.f32.gmra.mxu0 %v556
    %v594 = vpop.f32.mrf.mxu0
    %v595 = vadd.f32 %v575, %v594
    %596 = vdwg.mxu0
    %597 = vst [vmem:[#allocation4] sm:$0x3] %v595
    // Predicated region
    $region70: #{_lambda_.1} parent=1 // pred_check
      _
    $region71: #{_lambda_.1} parent=1 // pred_check_branch
      %599 = sbr.rel (0) target = $region73
    $region72: #{_lambda_.1} parent=1 // pred_region
      _
    $region73: #{_lambda_.1} parent=1 // pred_fallthru
      _
    // Predicated region
    $region74: #{_lambda_.1} parent=1 // pred_check
      _
    $region75: #{_lambda_.1} parent=1 // pred_check_branch
      %601 = sbr.rel (0) target = $region77
    $region76: #{_lambda_.1} parent=1 // pred_region
      %603 = vsyncadd [#allocation3], 0
      %s604 = sshll.u32 [#allocation2], 4
      %s605 = int_to_ptr.vmem [resolvable:$true] %s604
      %s606 = sshll.u32 %s18, 4
      %s607 = int_to_ptr.hbm [resolvable:$true] %s606
      %612 = dma.vmem_to_hbm [thread:$0]  %s605, 1024, %s607, [#allocation3], 256, 256, 16
    $region77: #{_lambda_.1} parent=1 // pred_fallthru
      _
    // Predicated region
    $region78: #{_lambda_.1} parent=1 // pred_check
      _
    $region79: #{_lambda_.1} parent=1 // pred_check_branch
      %614 = sbr.rel (0) target = $region81
    $region80: #{_lambda_.1} parent=1 // pred_region
      %616 = vsyncadd [#allocation5], 0
      %s618 = sshll.u32 [#allocation4], 4
      %s619 = int_to_ptr.vmem [resolvable:$true] %s618
      %s620 = sshll.u32 %s19, 4
      %s621 = int_to_ptr.hbm [resolvable:$true] %s620
      %623 = dma.vmem_to_hbm [thread:$0]  %s619, 32, %s621, [#allocation5]
    $region81: #{_lambda_.1} parent=1 // pred_fallthru
      _
    // Predicated region
    $region82: #{_lambda_.1} parent=1 // pred_check
      _
    $region83: #{_lambda_.1} parent=1 // pred_check_branch
      %625 = sbr.rel (0) target = $region85
    $region84: #{_lambda_.1} parent=1 // pred_region
      _
    $region85: #{_lambda_.1} parent=1 // pred_fallthru
      _
    // Predicated region
    $region86: #{_lambda_.1} parent=1 // pred_check
      _
    $region87: #{_lambda_.1} parent=1 // pred_check_branch
      %627 = sbr.rel (0) target = $region89
    $region88: #{_lambda_.1} parent=1 // pred_region
      %629 = dma.done [#allocation3], 1024
    $region89: #{_lambda_.1} parent=1 // pred_fallthru
      _
    // Predicated region
    $region90: #{_lambda_.1} parent=1 // pred_check
      _
    $region91: #{_lambda_.1} parent=1 // pred_check_branch
      %631 = sbr.rel (0) target = $region93
    $region92: #{_lambda_.1} parent=1 // pred_region
      %633 = dma.done [#allocation5], 32
    $region93: #{_lambda_.1} parent=1 // pred_fallthru
      _
    %634 = vsyncpa [#allocation3], 1
    %635 = vsyncpa [#allocation5], 1

</llo_original>
